<compile_context>
chip_gen: v5e
topology: v5e:2x2
jax: 0.10.0
libtpu: 0.0.40
codegen_flags: <defaults>
</compile_context>

<pallas_src>
import math

import jax
import jax.numpy as jnp
from jax.experimental import pallas as pl
from jax.experimental.pallas import tpu as pltpu


def _drop_path_kernel(scale_ref, x_ref, o_ref):
    # scale_ref: (G, 1, 1) float32, either 0.0 or 1/keep_prob per sample.
    # x_ref / o_ref: (G, TS, LW) tiles. Pure streaming multiply (VPU only).
    o_ref[...] = x_ref[...] * scale_ref[...].astype(x_ref.dtype)


_TARGET_BLOCK_BYTES = 4 << 20   # ~4 MiB per buffer; double-buffered in+out ≈ 16 MiB
_VMEM_LIMIT_BYTES = 32 << 20    # explicit scoped-VMEM limit, safe on v5e/v6e/v7x


def _choose_layout(B, feat, itemsize):
    """Pick lane width LW, padded feature size, rows/sample, tile TS, group G."""
    sub = max(8, 32 // itemsize)                 # sublane granularity: 8/16/32 (4/2/1 B)

    # Lane width: avoid wrapper-side pad/slice whenever the feature size allows.
    if feat % 128 == 0:
        lw = 512 if feat % 512 == 0 else (256 if feat % 256 == 0 else 128)
        feat_p = feat
    elif feat <= 8 * 512:
        lw = feat                                # small ragged sample: one unpadded row
        feat_p = feat
    else:
        lw = 512                                 # large ragged sample: pad lane dim (rare)
        feat_p = pl.cdiv(feat, lw) * lw

    rows = feat_p // lw
    ts_max = max(sub, (_TARGET_BLOCK_BYTES // (lw * itemsize)) // sub * sub)

    if rows <= ts_max:
        # Whole sample fits one tile: pack G samples per block to amortize the
        # ~0.35 us per-grid-step overhead (biggest win for small feature maps).
        ts = rows
        g_fit = max(1, _TARGET_BLOCK_BYTES // max(1, rows * lw * itemsize))
        g_cap = min(B, g_fit)
        if B >= 2:
            g_cap = min(g_cap, max(1, B // 2))   # keep >=2 blocks for v7x megacore
        g = 1
        for cand in range(g_cap, 0, -1):
            if B % cand == 0:
                g = cand
                break
    else:
        ts = ts_max
        g = 1

    n_ft = pl.cdiv(rows, ts)

    # A single-block grid would leave one v7x TensorCore idle: split the feature axis.
    if B // g == 1 and n_ft == 1 and rows >= 2 * sub:
        ts = pl.cdiv(pl.cdiv(rows, 2), sub) * sub
        n_ft = pl.cdiv(rows, ts)

    return lw, feat_p, rows, ts, g, n_ft


def drop_path_pallas(x, drop_prob=0.0, training=False, scale_by_keep=True,
                     *, key=None, seed=0, donate_input=False):
    """Matches torch drop_path(x, drop_prob, training, scale_by_keep)."""
    if drop_prob == 0.0 or not training:
        return x
    keep_prob = 1.0 - drop_prob
    if key is None:
        # NOTE: callers should thread a fresh jax.random key per call/layer;
        # the integer seed is only a convenience fallback.
        key = jax.random.PRNGKey(seed)

    B = x.shape[0]
    feat = math.prod(x.shape[1:])
    itemsize = jnp.dtype(x.dtype).itemsize
    lw, feat_p, rows, ts, g, n_ft = _choose_layout(B, feat, itemsize)

    # Per-sample scale, precomputed in float32 (Bernoulli hoisted to XLA).
    keep = jax.random.bernoulli(key, p=keep_prob, shape=(B,)).astype(jnp.float32)
    inv_keep = (1.0 / keep_prob) if (keep_prob > 0.0 and scale_by_keep) else 1.0
    scale = (keep * jnp.float32(inv_keep)).reshape(B, 1, 1)

    x_flat = x.reshape(B, feat)
    if feat_p != feat:
        # TODO(synk): large non-128-multiple feature sizes still pay an XLA pad+slice
        # HBM round-trip; an in-kernel masked tail tile would remove it.
        x_flat = jnp.pad(x_flat, ((0, 0), (0, feat_p - feat)))
    x3 = x_flat.reshape(B, rows, lw)

    out3 = pl.pallas_call(
        _drop_path_kernel,
        out_shape=jax.ShapeDtypeStruct((B, rows, lw), x.dtype),
        grid_spec=pltpu.PrefetchScalarGridSpec(
            num_scalar_prefetch=0,
            grid=(B // g, n_ft),
            in_specs=[
                pl.BlockSpec((g, 1, 1), lambda b, t: (b, 0, 0)),      # per-sample scale
                pl.BlockSpec((g, ts, lw), lambda b, t: (b, t, 0)),    # x tile
            ],
            out_specs=pl.BlockSpec((g, ts, lw), lambda b, t: (b, t, 0)),
        ),
        compiler_params=pltpu.CompilerParams(
            dimension_semantics=("parallel", "parallel"),
            vmem_limit_bytes=_VMEM_LIMIT_BYTES,
        ),
        cost_estimate=pl.CostEstimate(
            flops=B * feat_p,
            transcendentals=0,
            bytes_accessed=2 * B * feat_p * itemsize + B * 4,
        ),
        input_output_aliases=({1: 0} if donate_input else {}),
    )(scale, x3)

    out_flat = out3.reshape(B, feat_p)
    if feat_p != feat:
        out_flat = out_flat[:, :feat]
    return out_flat.reshape(x.shape)


class DropPath:
    """JAX/Pallas equivalent of the torch DropPath module (no parameters)."""

    def __init__(self, drop_prob=None, scale_by_keep=True):
        self.drop_prob = drop_prob
        self.scale_by_keep = scale_by_keep
        self.training = True

    def __call__(self, x, *, key=None, seed=0):
        p = 0.0 if self.drop_prob is None else self.drop_prob
        return drop_path_pallas(x, p, self.training, self.scale_by_keep,
                                key=key, seed=seed)


if __name__ == "__main__":
    key = jax.random.PRNGKey(0)
    x = jax.random.normal(key, (2, 4, 16, 16), dtype=jnp.float32)  # NCHW-like

    module = DropPath(drop_prob=0.25)
    module.training = True
    out = jax.block_until_ready(module(x, seed=1234))

    keep_prob = 1.0 - 0.25
    ok = True
    # Each sample is either fully dropped (zeros) or scaled by 1/keep_prob.
    for b in range(x.shape[0]):
        ob, xb = out[b], x[b]
        dropped = bool(jnp.allclose(ob, 0.0))
        kept = bool(jnp.allclose(ob, xb / keep_prob, rtol=1e-5, atol=1e-5))
        ok = ok and (dropped or kept)

    # Eval / zero-prob path must be identity.
    module.training = False
    out_eval = jax.block_until_ready(module(x, seed=1234))
    ok = ok and bool(jnp.array_equal(out_eval, x))

    # Non-128-multiple feature size exercises the unpadded ragged-row path.
    x_odd = jax.random.normal(jax.random.PRNGKey(1), (2, 3, 5, 7), dtype=jnp.float32)
    out_odd = jax.block_until_ready(drop_path_pallas(x_odd, 0.25, True, seed=7))
    for b in range(x_odd.shape[0]):
        ob, xb = out_odd[b], x_odd[b]
        dropped = bool(jnp.allclose(ob, 0.0))
        kept = bool(jnp.allclose(ob, xb / keep_prob, rtol=1e-5, atol=1e-5))
        ok = ok and (dropped or kept)

    print("KERNEL_OK" if ok else "KERNEL_MISMATCH")
</pallas_src>

<mosaic_0001>
module attributes {stable_mosaic.version = 11 : i64} {
  func.func @_drop_path_kernel(%arg0: i32, %arg1: i32, %arg2: memref<1x1x1xf32, #tpu.memory_space<vmem>>, %arg3: memref<1x2x512xf32, #tpu.memory_space<vmem>>, %arg4: memref<1x2x512xf32, #tpu.memory_space<vmem>>) attributes {dimension_semantics = [#tpu.dimension_semantics<parallel>, #tpu.dimension_semantics<parallel>], iteration_bounds = array<i64: 2, 1>, scalar_prefetch = 0 : i64, scratch_operands = 0 : i64, tpu.core_type = #tpu.core_type<tc>, window_params = [{transform_indices = @transform_0, window_bounds = array<i64: 1, 1, 1>}, {transform_indices = @transform_1, window_bounds = array<i64: 1, 2, 512>}, {transform_indices = @transform_2, window_bounds = array<i64: 1, 2, 512>}]} {
    %c0 = arith.constant 0 : index
    %c0_0 = arith.constant 0 : index
    %c0_1 = arith.constant 0 : index
    %0 = vector.load %arg3[%c0, %c0_0, %c0_1] : memref<1x2x512xf32, #tpu.memory_space<vmem>>, vector<1x2x512xf32>
    %c0_2 = arith.constant 0 : index
    %c0_3 = arith.constant 0 : index
    %c0_4 = arith.constant 0 : index
    %1 = vector.load %arg2[%c0_2, %c0_3, %c0_4] : memref<1x1x1xf32, #tpu.memory_space<vmem>>, vector<1x1x1xf32>
    %2 = vector.broadcast %1 : vector<1x1x1xf32> to vector<1x2x512xf32>
    %3 = arith.mulf %0, %2 : vector<1x2x512xf32>
    %c0_5 = arith.constant 0 : index
    %c0_6 = arith.constant 0 : index
    %c0_7 = arith.constant 0 : index
    %4 = vector.load %arg4[%c0_5, %c0_6, %c0_7] : memref<1x2x512xf32, #tpu.memory_space<vmem>>, vector<1x2x512xf32>
    tpu.vector_store %arg4[%c0_5, %c0_6, %c0_7], %3 {strides = array<i32>} : memref<1x2x512xf32, #tpu.memory_space<vmem>>, vector<1x2x512xf32>,
    return
  }
  func.func @transform_0(%arg0: i32, %arg1: i32) -> (i32, i32, i32) {
    %c0_i32 = arith.constant 0 : i32
    %c0_i32_0 = arith.constant 0 : i32
    %c0_i32_1 = arith.constant 0 : i32
    return %arg0, %c0_i32, %c0_i32_0 : i32, i32, i32
  }
  func.func @transform_1(%arg0: i32, %arg1: i32) -> (i32, i32, i32) {
    %c0_i32 = arith.constant 0 : i32
    %c0_i32_0 = arith.constant 0 : i32
    return %arg0, %arg1, %c0_i32 : i32, i32, i32
  }
  func.func @transform_2(%arg0: i32, %arg1: i32) -> (i32, i32, i32) {
    %c0_i32 = arith.constant 0 : i32
    %c0_i32_0 = arith.constant 0 : i32
    return %arg0, %arg1, %c0_i32 : i32, i32, i32
  }
}

</mosaic_0001>

<llo_original>
// kernel: tpu_custom_call.1
$region0: #{tpu_custom_call.1}
  #allocation0 [shape = 'u32[]', space=smem, size = 0x4, offset = 0x4, fixed_abs, tag = 'smem constant byte address 0x4 - core index']
  #allocation1 [shape = 'u32[72,128]{1,0:T(1,128)}', space=vmem, size = 0x9000, scoped, tag = 'internal scratch']
  %s0 = inlined_call_operand.vmem [shape: f32[2,1,1], index: 0, kind: input, shape index: {}]
  %s1 = inlined_call_operand.hbm [shape: f32[2,2,512], index: 1, kind: input, shape index: {}]
  %s2 = inlined_call_operand.hbm [shape: f32[2,2,512], index: 2, kind: output, shape index: {}]
  %s3 = sld [smem:[#allocation0]]
  $region45: #{tpu_custom_call.1} parent=0
    _
  %s5 = ssub.s32 1, %s3
  %s6 = scalar_select 0, %s5, %s3
  $region1: #{tpu_custom_call.1} parent=0
    #allocation2 [shape = 'u8[8192]{0}', space=vmem, size = 0x2000, scoped, tag = 'input window, operand 1']
    #allocation3 [shape = 's32[2]{0}', space=sflag, size = 0x8, scoped, tag = 'scoped memory for tpu_custom_call.1']
    #allocation4 [shape = 's32[2]{0}', space=sflag, size = 0x8, scoped, tag = 'scoped memory for tpu_custom_call.1']
    #allocation5 [shape = 'u8[8192]{0}', space=vmem, size = 0x2000, scoped, tag = 'output window, operand 0']
    %7 = vsyncpa [#allocation3], 0
    %s8 = scalar_lea.sflag [#allocation3], 1
    %9 = vsyncpa %s8, 0
    %10 = vsyncpa [#allocation4], 0
    %s11 = scalar_lea.sflag [#allocation4], 1
    %12 = vsyncpa %s11, 0
    loop: start=0, step=1, limit=4
    $region2: #{tpu_custom_call.1} parent=1 // loop_pre_header
      _
    $region3: #{tpu_custom_call.1} parent=1 // loop_header
      %s14 = sphi 0, %s18
      %p15 = scmp.ge.s32.totalorder %s14, 4
      %s21 = sphi 0, %s33
      %s22 = sphi 0, %s29
      %s23 = sphi 0, %s21
      %s24 = sphi 0, %s22
      %s25 = sphi 0, %s23
      %s26 = sphi 0, %s24
      %s36 = sphi 0, %s38
      %s39 = sphi 0, %s36
      %s40 = sphi 0, %s39
      %s56 = sphi 0, %s40
      %s64 = sphi 0, %s66
      %s67 = sphi 0, %s64
      %s68 = sphi 0, %s67
      %s84 = sphi 0, %s68
      %s92 = sphi 0, %s94
      %s95 = sphi 0, %s92
      %s96 = sphi 0, %s95
      %s112 = sphi 0, %s96
    $region4: #{tpu_custom_call.1} parent=1 // loop_header_branch
      %17 = sbr.rel (%p15) target = $region8
    $region5: #{tpu_custom_call.1} parent=1 // loop_body
      %s19 = ssub.s32 %s14, 1
      %s20 = ssub.s32 %s14, 2
      %s27 = sadd.s32 1, %s22
      %p28 = scmp.ge.s32.totalorder %s27, 1
      %s29 = scalar_select %p28, 0, %s27
      %s30 = sadd.s32 1, %s21
      %s31 = scalar_select %p28, %s30, %s21
      %p32 = scmp.ge.s32.totalorder %s31, 2
      %s33 = scalar_select %p32, 0, %s31
      %s34 = ssub.s32 %s21, %s33
      %p35 = scmp.eq.s32.totalorder %s34, 0
      %s37 = sadd.s32 %s36, 1
      %s38 = scalar_select %p35, %s36, %s37
      %p41 = pneg %p35
      %p42 = scmp.eq.s32.totalorder %s14, 1
      %p43 = por %p41, %p42
      %p44 = scmp.ne.s32.totalorder %s36, %s39
      %p45 = scmp.eq.s32.totalorder %s14, 0
      %p46 = por %p44, %p45
      %p47 = scmp.ne.s32.totalorder %s36, %s39
      %p48 = scmp.eq.s32.totalorder %s19, 1
      %p49 = por %p47, %p48
      %p50 = scmp.ne.s32.totalorder %s39, %s40
      %p51 = scmp.eq.s32.totalorder %s19, 0
      %p52 = por %p50, %p51
      %p53 = scmp.ne.s32.totalorder %s39, %s40
      %p54 = scmp.eq.s32.totalorder %s20, 1
      %p55 = por %p53, %p54
      %p57 = scmp.ne.s32.totalorder %s40, %s56
      %p58 = scmp.eq.s32.totalorder %s20, 0
      %p59 = por %p57, %p58
      %s60 = ssub.s32 %s21, %s33
      %s61 = ssub.s32 %s22, %s29
      %s62 = sor.u32 %s60, %s61
      %p63 = scmp.eq.s32.totalorder %s62, 0
      %s65 = sadd.s32 %s64, 1
      %s66 = scalar_select %p63, %s64, %s65
      %p69 = pneg %p63
      %p70 = scmp.eq.s32.totalorder %s14, 1
      %p71 = por %p69, %p70
      %p72 = scmp.ne.s32.totalorder %s64, %s67
      %p73 = scmp.eq.s32.totalorder %s14, 0
      %p74 = por %p72, %p73
      %p75 = scmp.ne.s32.totalorder %s64, %s67
      %p76 = scmp.eq.s32.totalorder %s19, 1
      %p77 = por %p75, %p76
      %p78 = scmp.ne.s32.totalorder %s67, %s68
      %p79 = scmp.eq.s32.totalorder %s19, 0
      %p80 = por %p78, %p79
      %p81 = scmp.ne.s32.totalorder %s67, %s68
      %p82 = scmp.eq.s32.totalorder %s20, 1
      %p83 = por %p81, %p82
      %p85 = scmp.ne.s32.totalorder %s68, %s84
      %p86 = scmp.eq.s32.totalorder %s20, 0
      %p87 = por %p85, %p86
      %s88 = ssub.s32 %s21, %s33
      %s89 = ssub.s32 %s22, %s29
      %s90 = sor.u32 %s88, %s89
      %p91 = scmp.eq.s32.totalorder %s90, 0
      %s93 = sadd.s32 %s92, 1
      %s94 = scalar_select %p91, %s92, %s93
      %p97 = pneg %p91
      %p98 = scmp.eq.s32.totalorder %s14, 1
      %p99 = por %p97, %p98
      %p100 = scmp.ne.s32.totalorder %s92, %s95
      %p101 = scmp.eq.s32.totalorder %s14, 0
      %p102 = por %p100, %p101
      %p103 = scmp.ne.s32.totalorder %s92, %s95
      %p104 = scmp.eq.s32.totalorder %s19, 1
      %p105 = por %p103, %p104
      %p106 = scmp.ne.s32.totalorder %s95, %s96
      %p107 = scmp.eq.s32.totalorder %s19, 0
      %p108 = por %p106, %p107
      %p109 = scmp.ne.s32.totalorder %s95, %s96
      %p110 = scmp.eq.s32.totalorder %s20, 1
      %p111 = por %p109, %p110
      %p113 = scmp.ne.s32.totalorder %s96, %s112
      %p114 = scmp.eq.s32.totalorder %s20, 0
      %p115 = por %p113, %p114
      %p116 = scmp.le.s32.totalorder 1, %s14
      %p117 = scmp.lt.s32.totalorder %s14, 3
      %p118 = pnand %p116, %p117
      %p119 = pneg %p118
      // Predicated region
      $region9: #{tpu_custom_call.1} parent=5 // pred_check
        _
      $region10: #{tpu_custom_call.1} parent=5 // pred_check_branch
        %121 = sbr.rel (%p118) target = $region12
      $region11: #{tpu_custom_call.1} parent=5 // pred_region
        %s122 = ssub.s32 %s14, 1
      $region12: #{tpu_custom_call.1} parent=5 // pred_fallthru
        _
      %p123 = scmp.lt.s32.totalorder %s14, 2
      // Predicated region
      $region13: #{tpu_custom_call.1} parent=5 // pred_check
        %p124 = pneg %p123
      $region14: #{tpu_custom_call.1} parent=5 // pred_check_branch
        %126 = sbr.rel (%p124) target = $region16
      $region15: #{tpu_custom_call.1} parent=5 // pred_region
        // Predicated region
        $region17: #{tpu_custom_call.1} parent=15 // pred_check
          %p127 = pneg %p46
        $region18: #{tpu_custom_call.1} parent=15 // pred_check_branch
          %129 = sbr.rel (%p127) target = $region20
        $region19: #{tpu_custom_call.1} parent=15 // pred_region
          %p130 = scmp.lt.s32.totalorder %s21, 1
          %s131 = scalar_select %p130, %s21, 1
          %s132 = scalar_lea.vmem %s0, %s131
        $region20: #{tpu_custom_call.1} parent=15 // pred_fallthru
          _
        // Predicated region
        $region21: #{tpu_custom_call.1} parent=15 // pred_check
          %p133 = pneg %p74
        $region22: #{tpu_custom_call.1} parent=15 // pred_check_branch
          %135 = sbr.rel (%p133) target = $region24
        $region23: #{tpu_custom_call.1} parent=15 // pred_region
          %s136 = sand.u32 %s64, 1
          %s137 = scalar_lea.sflag [#allocation3], %s136
          %s138 = sand.u32 %s64, 1
          %s139 = smul.addr %s138, 8
          %s140 = scalar_lea.vmem [#allocation2], %s139
          %142 = vsyncadd %s137, 0
          %s143 = smul.addr %s22, 4
          %s144 = smul.addr %s21, 4
          %s145 = sadd.s32 %s143, %s144
          %s146 = smul.addr %s145, 2
          %s147 = scalar_lea.hbm %s1, %s146
          %s149 = sshll.u32 %s147, 4
          %s150 = int_to_ptr.hbm [resolvable:$true] %s149
          %s151 = sshll.u32 %s140, 4
          %s152 = int_to_ptr.vmem [resolvable:$true] %s151
          %154 = dma.hbm_to_vmem [thread:$0]  %s150, 128, %s152, %s137
        $region24: #{tpu_custom_call.1} parent=15 // pred_fallthru
          _
      $region16: #{tpu_custom_call.1} parent=5 // pred_fallthru
        _
      %p155 = scmp.le.s32.totalorder 1, %s14
      %p156 = scmp.lt.s32.totalorder %s14, 3
      %p157 = pnand %p155, %p156
      %p158 = pneg %p157
      // Predicated region
      $region25: #{tpu_custom_call.1} parent=5 // pred_check
        _
      $region26: #{tpu_custom_call.1} parent=5 // pred_check_branch
        %160 = sbr.rel (%p157) target = $region28
      $region27: #{tpu_custom_call.1} parent=5 // pred_region
        %s161 = ssub.s32 %s14, 1
        %s162 = sand.u32 %s67, 1
        %s163 = scalar_lea.sflag [#allocation3], %s162
        %s164 = sand.u32 %s67, 1
        %s165 = smul.addr %s164, 8
        %s166 = scalar_lea.vmem [#allocation2], %s165
        // Predicated region
        $region29: #{tpu_custom_call.1} parent=27 // pred_check
          %p167 = pneg %p80
        $region30: #{tpu_custom_call.1} parent=27 // pred_check_branch
          %169 = sbr.rel (%p167) target = $region32
        $region31: #{tpu_custom_call.1} parent=27 // pred_region
          %171 = dma.done %s163, 128
        $region32: #{tpu_custom_call.1} parent=27 // pred_fallthru
          _
        %p172 = scmp.lt.s32.totalorder %s23, 1
        %s173 = scalar_select %p172, %s23, 1
        %s174 = scalar_lea.vmem %s0, %s173
        %p175 = pneg %p52
        %p176 = pneg %p49
        %s177 = sand.u32 %s67, 1
        %s178 = scalar_lea.sflag [#allocation3], %s177
        %s179 = sand.u32 %s67, 1
        %s180 = smul.addr %s179, 8
        %s181 = scalar_lea.vmem [#allocation2], %s180
        %p182 = pneg %p80
        %p183 = pneg %p77
        %p184 = pneg %p108
        %p185 = pneg %p105
        %s186 = sand.u32 %s95, 1
        %s187 = scalar_lea.sflag [#allocation4], %s186
        %s188 = sand.u32 %s95, 1
        %s189 = smul.addr %s188, 8
        %s190 = scalar_lea.vmem [#allocation5], %s189
        %p191 = scmp.lt.s32.totalorder %s23, 1
        %s192 = scalar_select %p191, %s23, 1
        %s193 = scalar_lea.vmem %s0, %s192
        %v194 = vld [vmem:[%s166] sm:$0xff]
        %v195 = vld [vmem:[%s193] sm:$0x1]
        %v197 = vperm.slane %v195, 0
        %198 = vset.pattern.permute.xlu0 0
        %199 = vperm.xlu0 %198, %v197
        %v200 = vpop.permute.xlu0 %199
        %v202 = vmul.f32 %v194, %v200
        %203 = vst [vmem:[%s190] sm:$0xff] %v202
        %s204 = sand.u32 %s95, 1
        %s205 = scalar_lea.sflag [#allocation4], %s204
        %s206 = sand.u32 %s95, 1
        %s207 = smul.addr %s206, 8
        %s208 = scalar_lea.vmem [#allocation5], %s207
        // Predicated region
        $region33: #{tpu_custom_call.1} parent=27 // pred_check
          %p209 = pneg %p105
        $region34: #{tpu_custom_call.1} parent=27 // pred_check_branch
          %211 = sbr.rel (%p209) target = $region36
        $region35: #{tpu_custom_call.1} parent=27 // pred_region
          %213 = vsyncadd %s205, 0
          %s214 = smul.addr %s24, 4
          %s215 = smul.addr %s23, 4
          %s216 = sadd.s32 %s214, %s215
          %s217 = smul.addr %s216, 2
          %s218 = scalar_lea.hbm %s2, %s217
          %s220 = sshll.u32 %s208, 4
          %s221 = int_to_ptr.vmem [resolvable:$true] %s220
          %s222 = sshll.u32 %s218, 4
          %s223 = int_to_ptr.hbm [resolvable:$true] %s222
          %225 = dma.vmem_to_hbm [thread:$0]  %s221, 128, %s223, %s205
        $region36: #{tpu_custom_call.1} parent=27 // pred_fallthru
          _
      $region28: #{tpu_custom_call.1} parent=5 // pred_fallthru
        _
      %p226 = scmp.le.s32.totalorder 2, %s14
      // Predicated region
      $region37: #{tpu_custom_call.1} parent=5 // pred_check
        %p227 = pneg %p226
      $region38: #{tpu_custom_call.1} parent=5 // pred_check_branch
        %229 = sbr.rel (%p227) target = $region40
      $region39: #{tpu_custom_call.1} parent=5 // pred_region
        %s230 = ssub.s32 %s14, 2
        // Predicated region
        $region41: #{tpu_custom_call.1} parent=39 // pred_check
          %p231 = pneg %p111
        $region42: #{tpu_custom_call.1} parent=39 // pred_check_branch
          %233 = sbr.rel (%p231) target = $region44
        $region43: #{tpu_custom_call.1} parent=39 // pred_region
          %s234 = sand.u32 %s96, 1
          %s235 = scalar_lea.sflag [#allocation4], %s234
          %s236 = sand.u32 %s96, 1
          %s237 = smul.addr %s236, 8
          %s238 = scalar_lea.vmem [#allocation5], %s237
          %240 = dma.done %s235, 128
        $region44: #{tpu_custom_call.1} parent=39 // pred_fallthru
          _
      $region40: #{tpu_custom_call.1} parent=5 // pred_fallthru
        _
    $region6: #{tpu_custom_call.1} parent=1 // loop_footer
      %s18 = sadd.s32 1, %s14
    $region7: #{tpu_custom_call.1} parent=1 // loop_footer_branch
      %13 = sbr.rel target = $region3
    $region8: #{tpu_custom_call.1} parent=1 // loop_exit
      _
    %241 = vsyncpa [#allocation3], 1
    %s242 = scalar_lea.sflag [#allocation3], 1
    %243 = vsyncpa %s242, 1
    %244 = vsyncpa [#allocation4], 1
    %s245 = scalar_lea.sflag [#allocation4], 1
    %246 = vsyncpa %s245, 1

</llo_original>
